<compile_context>
chip_gen: v6e
topology: v6e:2x2x1
jax: 0.10.0
libtpu: 0.0.40
codegen_flags: <defaults>
</compile_context>

<pallas_src>
import jax
import jax.numpy as jnp
from jax.experimental import pallas as pl
from jax.experimental.pallas import tpu as pltpu

_LANE = 128
_SUBLANE = 8


def _round_up(x, m):
    return ((x + m - 1) // m) * m


def _choose_spatial_tiling(c, s_raw, itemsize, n,
                           target_block_bytes=4 << 20,
                           vmem_budget_bytes=32 << 20):
    """Sublane rows per spatial tile (input block_shape = (1, c, s_tile, 128))."""
    # Sub-32-bit dtypes pack along sublanes: keep tiles aligned to the packed
    # sublane granularity (8 rows f32 / 16 bf16 / 32 int8-fp8).
    gran = 32 if itemsize == 1 else (16 if itemsize == 2 else _SUBLANE)
    if s_raw <= gran:
        return s_raw                          # tiny input: one full-extent tile
    in_row = c * _LANE * itemsize             # one sublane row of ONE input block
    f32_row = _LANE * 4
    # Per-step VMEM: 2 inputs x 2 pipeline buffers x block, plus ~6
    # (s_tile, 128) f32 working arrays (per-channel squares, diff, norms).
    per_row = 4 * in_row + 6 * f32_row
    s_tile = min(vmem_budget_bytes // per_row, target_block_bytes // in_row)
    s_tile = max(gran, (s_tile // gran) * gran)
    # Never let a block START past the true extent (only the last tile may be
    # ragged); and keep >= 2 spatial tiles when N == 1 so the second
    # TensorCore (v7x megacore) gets a parallel chunk.
    s_tile = min(s_tile, max(gran, (s_raw // gran) * gran))
    if n == 1:
        s_tile = min(s_tile, max(gran, _round_up(-(-s_raw // 2), gran)))
    return s_tile


def _make_kernel(c, s_tile, s_raw, s_inner, needs_mask, acc_rows):
    fold = s_tile > acc_rows                  # fold (s_tile,128) -> (8,128)

    def kernel(fake_ref, real_ref, out_ref, acc_ref):
        s = pl.program_id(2)

        @pl.when(s == 0)
        def _():
            acc_ref[...] = jnp.zeros_like(acc_ref)

        # Channel reduction as a short static loop: only (s_tile, 128)-sized
        # f32 temporaries are ever live (no C-sized f32 copy of the block).
        sq_fake = jnp.zeros((s_tile, _LANE), jnp.float32)
        sq_real = jnp.zeros((s_tile, _LANE), jnp.float32)
        for ci in range(c):
            f = fake_ref[0, ci].astype(jnp.float32)
            r = 1.0 - real_ref[0, ci].astype(jnp.float32)
            sq_fake = sq_fake + f * f
            sq_real = sq_real + r * r

        norm = jnp.sqrt(sq_fake) + jnp.sqrt(sq_real)          # (s_tile, 128)

        if needs_mask:
            # Zero BOTH branches' contributions for rows past the true spatial
            # extent (ragged last tile / empty chunk-overhang steps).
            tile = pl.program_id(1) * s_inner + s
            valid = s_raw - tile * s_tile                      # may be <= 0
            row = jax.lax.broadcasted_iota(jnp.int32, (s_tile, _LANE), 0)
            norm = jnp.where(row < valid, norm, 0.0)

        if fold:
            # Sublane-slab fold into a fixed (8, 128) accumulator (pure VPU).
            norm = norm.reshape(s_tile // _SUBLANE, _SUBLANE, _LANE).sum(axis=0)
        acc_ref[...] += norm

        @pl.when(s == pl.num_programs(2) - 1)
        def _():
            # One small cross-lane reduce per (n, chunk); broadcast into a
            # lane-dense (1, 1, 8, 128) output block (wrapper reads [.., 0, 0]).
            total = jnp.sum(acc_ref[...])
            out_ref[...] = jnp.full(out_ref.shape, total, dtype=jnp.float32)

    return kernel


def ld_loss(d_fake_img, d_real_img):
    """LDLoss forward. Inputs: (N, C, H, W) arrays. Returns scalar f32."""
    assert d_fake_img.shape == d_real_img.shape
    n, c, h, w = d_fake_img.shape
    hw = h * w
    itemsize = jnp.dtype(d_fake_img.dtype).itemsize

    fake = d_fake_img.reshape(n, c, hw)
    real = d_real_img.reshape(n, c, hw)
    hw128 = _round_up(hw, _LANE)
    if hw128 != hw:
        # Lane remainder only (<128 elements per (n, c) row); pad values are
        # chosen so padded lanes contribute exactly 0 to both norm sums.
        pad = ((0, 0), (0, 0), (0, hw128 - hw))
        fake = jnp.pad(fake, pad, constant_values=0)   # ||0||     -> 0
        real = jnp.pad(real, pad, constant_values=1)   # ||1 - 1|| -> 0
    s_raw = hw128 // _LANE
    fake = fake.reshape(n, c, s_raw, _LANE)
    real = real.reshape(n, c, s_raw, _LANE)

    # TODO(synk): for very large C even a minimum-height block can exceed the
    # VMEM budget; discriminator heads are small (C <= 8) so C is never tiled.
    s_tile = _choose_spatial_tiling(c, s_raw, itemsize, n)
    s_tiles = -(-s_raw // s_tile)

    # v7x megacore: if the batch alone cannot feed two TensorCores, expose a
    # second parallel axis by chunking the spatial tiles.
    n_chunks = 2 if (n == 1 and s_tiles >= 2) else 1
    s_inner = -(-s_tiles // n_chunks)

    needs_mask = (s_raw % s_tile != 0) or (n_chunks * s_inner != s_tiles)
    acc_rows = _SUBLANE if s_tile % _SUBLANE == 0 else s_tile
    kernel = _make_kernel(c, s_tile, s_raw, s_inner, needs_mask, acc_rows)

    last_tile = s_tiles - 1

    def in_map(i, ch, s):
        # Clamp so a (rare) fully-empty trailing step of the last chunk
        # re-reads the last real tile instead of walking past the array; the
        # in-kernel mask zeroes its contribution.
        return (i, 0, jnp.minimum(ch * s_inner + s, last_tile), 0)

    in_spec = pl.BlockSpec((1, c, s_tile, _LANE), in_map)

    partials = pl.pallas_call(
        kernel,
        out_shape=jax.ShapeDtypeStruct((n, n_chunks, _SUBLANE, _LANE),
                                       jnp.float32),
        grid_spec=pltpu.PrefetchScalarGridSpec(
            num_scalar_prefetch=0,
            grid=(n, n_chunks, s_inner),
            in_specs=[in_spec, in_spec],
            out_specs=pl.BlockSpec((1, 1, _SUBLANE, _LANE),
                                   lambda i, ch, s: (i, ch, 0, 0)),
            scratch_shapes=[pltpu.VMEM((acc_rows, _LANE), jnp.float32)],
        ),
        compiler_params=pltpu.CompilerParams(
            dimension_semantics=("parallel", "parallel", "arbitrary"),
            vmem_limit_bytes=48 << 20,
        ),
        cost_estimate=pl.CostEstimate(
            flops=6 * n * c * hw,
            transcendentals=2 * n * hw,
            bytes_accessed=2 * n * c * hw128 * itemsize
            + n * n_chunks * _SUBLANE * _LANE * 4,
        ),
    )(fake, real)

    # Sum of per-(n, chunk) partials divided by the TRUE element count.
    return jnp.sum(partials[:, :, 0, 0]) / jnp.float32(n * hw)


def _ld_loss_ref(d_fake_img, d_real_img):
    lf = jnp.mean(jnp.sqrt(jnp.sum(d_fake_img.astype(jnp.float32) ** 2, axis=1)))
    lr = jnp.mean(jnp.sqrt(jnp.sum((1.0 - d_real_img.astype(jnp.float32)) ** 2,
                                   axis=1)))
    return lf + lr


if __name__ == "__main__":
    key = jax.random.PRNGKey(0)
    keys = jax.random.split(key, 8)

    # Case 1: 128-aligned fused spatial axis, small channels, batch parallel.
    d_fake = jax.random.normal(keys[0], (2, 4, 16, 16), dtype=jnp.float32)
    d_real = jax.random.normal(keys[1], (2, 4, 16, 16), dtype=jnp.float32)
    loss = jax.block_until_ready(ld_loss(d_fake, d_real))
    ref = jax.block_until_ready(_ld_loss_ref(d_fake, d_real))
    assert jnp.allclose(loss, ref, rtol=1e-5, atol=1e-5), (loss, ref)

    # Case 2: non-128-aligned spatial size exercises the lane-pad path.
    d_fake2 = jax.random.normal(keys[2], (2, 3, 5, 5), dtype=jnp.float32)
    d_real2 = jax.random.normal(keys[3], (2, 3, 5, 5), dtype=jnp.float32)
    loss2 = jax.block_until_ready(ld_loss(d_fake2, d_real2))
    ref2 = jax.block_until_ready(_ld_loss_ref(d_fake2, d_real2))
    assert jnp.allclose(loss2, ref2, rtol=1e-5, atol=1e-5), (loss2, ref2)

    # Case 3: N=1 exercises spatial chunking (megacore path) + ragged-tile mask.
    d_fake3 = jax.random.normal(keys[4], (1, 1, 34, 34), dtype=jnp.float32)
    d_real3 = jax.random.normal(keys[5], (1, 1, 34, 34), dtype=jnp.float32)
    loss3 = jax.block_until_ready(ld_loss(d_fake3, d_real3))
    ref3 = jax.block_until_ready(_ld_loss_ref(d_fake3, d_real3))
    assert jnp.allclose(loss3, ref3, rtol=1e-5, atol=1e-5), (loss3, ref3)

    # Case 4: larger spatial extent exercises the sublane-slab accumulator fold.
    d_fake4 = jax.random.normal(keys[6], (2, 2, 64, 64), dtype=jnp.float32)
    d_real4 = jax.random.normal(keys[7], (2, 2, 64, 64), dtype=jnp.float32)
    loss4 = jax.block_until_ready(ld_loss(d_fake4, d_real4))
    ref4 = jax.block_until_ready(_ld_loss_ref(d_fake4, d_real4))
    assert jnp.allclose(loss4, ref4, rtol=1e-5, atol=1e-5), (loss4, ref4)

    print("KERNEL_OK")
</pallas_src>

<mosaic_0001>
module attributes {stable_mosaic.version = 11 : i64} {
  func.func @kernel(%arg0: i32, %arg1: i32, %arg2: i32, %arg3: memref<1x4x2x128xf32, #tpu.memory_space<vmem>>, %arg4: memref<1x4x2x128xf32, #tpu.memory_space<vmem>>, %arg5: memref<1x1x8x128xf32, #tpu.memory_space<vmem>>, %arg6: memref<2x128xf32, #tpu.memory_space<vmem>>) attributes {dimension_semantics = [#tpu.dimension_semantics<parallel>, #tpu.dimension_semantics<parallel>, #tpu.dimension_semantics<arbitrary>], iteration_bounds = array<i64: 2, 1, 1>, scalar_prefetch = 0 : i64, scratch_operands = 1 : i64, tpu.core_type = #tpu.core_type<tc>, window_params = [{transform_indices = @transform_0, window_bounds = array<i64: 1, 4, 2, 128>}, {transform_indices = @transform_1, window_bounds = array<i64: 1, 4, 2, 128>}, {transform_indices = @transform_2, window_bounds = array<i64: 1, 1, 8, 128>}]} {
    %c0_i32 = arith.constant 0 : i32
    %0 = arith.cmpi eq, %arg2, %c0_i32 : i32
    %1 = arith.extui %0 : i1 to i32
    %c0_i32_0 = arith.constant 0 : i32
    %2 = arith.cmpi ne, %1, %c0_i32_0 : i32
    scf.if %2 {
      %cst_40 = arith.constant 0.000000e+00 : f32
      %54 = vector.broadcast %cst_40 : f32 to vector<2x128xf32>
      %c0_41 = arith.constant 0 : index
      %c0_42 = arith.constant 0 : index
      %55 = vector.load %arg6[%c0_41, %c0_42] : memref<2x128xf32, #tpu.memory_space<vmem>>, vector<2x128xf32>
      tpu.vector_store %arg6[%c0_41, %c0_42], %54 {strides = array<i32>} : memref<2x128xf32, #tpu.memory_space<vmem>>, vector<2x128xf32>,
    } else {
    }
    %cst = arith.constant 0.000000e+00 : f32
    %3 = vector.broadcast %cst : f32 to vector<2x128xf32>
    %cst_1 = arith.constant 0.000000e+00 : f32
    %4 = vector.broadcast %cst_1 : f32 to vector<2x128xf32>
    %c0 = arith.constant 0 : index
    %c0_2 = arith.constant 0 : index
    %c0_3 = arith.constant 0 : index
    %c0_4 = arith.constant 0 : index
    %5 = vector.load %arg3[%c0, %c0_2, %c0_3, %c0_4] : memref<1x4x2x128xf32, #tpu.memory_space<vmem>>, vector<1x1x2x128xf32>
    %6 = vector.shape_cast %5 : vector<1x1x2x128xf32> to vector<2x128xf32>
    %c0_5 = arith.constant 0 : index
    %c0_6 = arith.constant 0 : index
    %c0_7 = arith.constant 0 : index
    %c0_8 = arith.constant 0 : index
    %7 = vector.load %arg4[%c0_5, %c0_6, %c0_7, %c0_8] : memref<1x4x2x128xf32, #tpu.memory_space<vmem>>, vector<1x1x2x128xf32>
    %8 = vector.shape_cast %7 : vector<1x1x2x128xf32> to vector<2x128xf32>
    %cst_9 = arith.constant 1.000000e+00 : f32
    %9 = vector.broadcast %cst_9 : f32 to vector<2x128xf32>
    %10 = arith.subf %9, %8 : vector<2x128xf32>
    %11 = arith.mulf %6, %6 : vector<2x128xf32>
    %12 = arith.addf %3, %11 : vector<2x128xf32>
    %13 = arith.mulf %10, %10 : vector<2x128xf32>
    %14 = arith.addf %4, %13 : vector<2x128xf32>
    %c0_10 = arith.constant 0 : index
    %c1 = arith.constant 1 : index
    %c0_11 = arith.constant 0 : index
    %c0_12 = arith.constant 0 : index
    %15 = vector.load %arg3[%c0_10, %c1, %c0_11, %c0_12] : memref<1x4x2x128xf32, #tpu.memory_space<vmem>>, vector<1x1x2x128xf32>
    %16 = vector.shape_cast %15 : vector<1x1x2x128xf32> to vector<2x128xf32>
    %c0_13 = arith.constant 0 : index
    %c1_14 = arith.constant 1 : index
    %c0_15 = arith.constant 0 : index
    %c0_16 = arith.constant 0 : index
    %17 = vector.load %arg4[%c0_13, %c1_14, %c0_15, %c0_16] : memref<1x4x2x128xf32, #tpu.memory_space<vmem>>, vector<1x1x2x128xf32>
    %18 = vector.shape_cast %17 : vector<1x1x2x128xf32> to vector<2x128xf32>
    %cst_17 = arith.constant 1.000000e+00 : f32
    %19 = vector.broadcast %cst_17 : f32 to vector<2x128xf32>
    %20 = arith.subf %19, %18 : vector<2x128xf32>
    %21 = arith.mulf %16, %16 : vector<2x128xf32>
    %22 = arith.addf %12, %21 : vector<2x128xf32>
    %23 = arith.mulf %20, %20 : vector<2x128xf32>
    %24 = arith.addf %14, %23 : vector<2x128xf32>
    %c0_18 = arith.constant 0 : index
    %c2 = arith.constant 2 : index
    %c0_19 = arith.constant 0 : index
    %c0_20 = arith.constant 0 : index
    %25 = vector.load %arg3[%c0_18, %c2, %c0_19, %c0_20] : memref<1x4x2x128xf32, #tpu.memory_space<vmem>>, vector<1x1x2x128xf32>
    %26 = vector.shape_cast %25 : vector<1x1x2x128xf32> to vector<2x128xf32>
    %c0_21 = arith.constant 0 : index
    %c2_22 = arith.constant 2 : index
    %c0_23 = arith.constant 0 : index
    %c0_24 = arith.constant 0 : index
    %27 = vector.load %arg4[%c0_21, %c2_22, %c0_23, %c0_24] : memref<1x4x2x128xf32, #tpu.memory_space<vmem>>, vector<1x1x2x128xf32>
    %28 = vector.shape_cast %27 : vector<1x1x2x128xf32> to vector<2x128xf32>
    %cst_25 = arith.constant 1.000000e+00 : f32
    %29 = vector.broadcast %cst_25 : f32 to vector<2x128xf32>
    %30 = arith.subf %29, %28 : vector<2x128xf32>
    %31 = arith.mulf %26, %26 : vector<2x128xf32>
    %32 = arith.addf %22, %31 : vector<2x128xf32>
    %33 = arith.mulf %30, %30 : vector<2x128xf32>
    %34 = arith.addf %24, %33 : vector<2x128xf32>
    %c0_26 = arith.constant 0 : index
    %c3 = arith.constant 3 : index
    %c0_27 = arith.constant 0 : index
    %c0_28 = arith.constant 0 : index
    %35 = vector.load %arg3[%c0_26, %c3, %c0_27, %c0_28] : memref<1x4x2x128xf32, #tpu.memory_space<vmem>>, vector<1x1x2x128xf32>
    %36 = vector.shape_cast %35 : vector<1x1x2x128xf32> to vector<2x128xf32>
    %c0_29 = arith.constant 0 : index
    %c3_30 = arith.constant 3 : index
    %c0_31 = arith.constant 0 : index
    %c0_32 = arith.constant 0 : index
    %37 = vector.load %arg4[%c0_29, %c3_30, %c0_31, %c0_32] : memref<1x4x2x128xf32, #tpu.memory_space<vmem>>, vector<1x1x2x128xf32>
    %38 = vector.shape_cast %37 : vector<1x1x2x128xf32> to vector<2x128xf32>
    %cst_33 = arith.constant 1.000000e+00 : f32
    %39 = vector.broadcast %cst_33 : f32 to vector<2x128xf32>
    %40 = arith.subf %39, %38 : vector<2x128xf32>
    %41 = arith.mulf %36, %36 : vector<2x128xf32>
    %42 = arith.addf %32, %41 : vector<2x128xf32>
    %43 = arith.mulf %40, %40 : vector<2x128xf32>
    %44 = arith.addf %34, %43 : vector<2x128xf32>
    %45 = math.sqrt %42 : vector<2x128xf32>
    %46 = math.sqrt %44 : vector<2x128xf32>
    %47 = arith.addf %45, %46 : vector<2x128xf32>
    %c0_34 = arith.constant 0 : index
    %c0_35 = arith.constant 0 : index
    %48 = vector.load %arg6[%c0_34, %c0_35] : memref<2x128xf32, #tpu.memory_space<vmem>>, vector<2x128xf32>
    %49 = arith.addf %48, %47 : vector<2x128xf32>
    %c0_36 = arith.constant 0 : index
    %c0_37 = arith.constant 0 : index
    %50 = vector.load %arg6[%c0_36, %c0_37] : memref<2x128xf32, #tpu.memory_space<vmem>>, vector<2x128xf32>
    tpu.vector_store %arg6[%c0_36, %c0_37], %49 {strides = array<i32>} : memref<2x128xf32, #tpu.memory_space<vmem>>, vector<2x128xf32>,
    %c0_i32_38 = arith.constant 0 : i32
    %51 = arith.cmpi eq, %arg2, %c0_i32_38 : i32
    %52 = arith.extui %51 : i1 to i32
    %c0_i32_39 = arith.constant 0 : i32
    %53 = arith.cmpi ne, %52, %c0_i32_39 : i32
    scf.if %53 {
      %c0_40 = arith.constant 0 : index
      %c0_41 = arith.constant 0 : index
      %54 = vector.load %arg6[%c0_40, %c0_41] : memref<2x128xf32, #tpu.memory_space<vmem>>, vector<2x128xf32>
      %55 = vector.shape_cast %54 : vector<2x128xf32> to vector<1x2x128xf32>
      %cst_42 = arith.constant dense<0.000000e+00> : vector<1xf32>
      %56 = vector.multi_reduction <add>, %55, %cst_42 [1, 2] : vector<1x2x128xf32> to vector<1xf32>
      %57 = vector.shape_cast %56 : vector<1xf32> to vector<1x1x1xf32>
      %58 = vector.extract %57[0, 0, 0] : f32 from vector<1x1x1xf32>
      %59 = vector.broadcast %58 : f32 to vector<1x1x8x128xf32>
      %c0_43 = arith.constant 0 : index
      %c0_44 = arith.constant 0 : index
      %c0_45 = arith.constant 0 : index
      %c0_46 = arith.constant 0 : index
      %60 = vector.load %arg5[%c0_43, %c0_44, %c0_45, %c0_46] : memref<1x1x8x128xf32, #tpu.memory_space<vmem>>, vector<1x1x8x128xf32>
      tpu.vector_store %arg5[%c0_43, %c0_44, %c0_45, %c0_46], %59 {strides = array<i32>} : memref<1x1x8x128xf32, #tpu.memory_space<vmem>>, vector<1x1x8x128xf32>,
    } else {
    }
    return
  }
  func.func @transform_0(%arg0: i32, %arg1: i32, %arg2: i32) -> (i32, i32, i32, i32) {
    %c1_i32 = arith.constant 1 : i32
    %0 = arith.muli %arg1, %c1_i32 : i32
    %1 = arith.addi %0, %arg2 : i32
    %c0_i32 = arith.constant 0 : i32
    %2 = arith.minsi %1, %c0_i32 : i32
    %c0_i32_0 = arith.constant 0 : i32
    %c0_i32_1 = arith.constant 0 : i32
    %c0_i32_2 = arith.constant 0 : i32
    return %arg0, %c0_i32_0, %2, %c0_i32_1 : i32, i32, i32, i32
  }
  func.func @transform_1(%arg0: i32, %arg1: i32, %arg2: i32) -> (i32, i32, i32, i32) {
    %c1_i32 = arith.constant 1 : i32
    %0 = arith.muli %arg1, %c1_i32 : i32
    %1 = arith.addi %0, %arg2 : i32
    %c0_i32 = arith.constant 0 : i32
    %2 = arith.minsi %1, %c0_i32 : i32
    %c0_i32_0 = arith.constant 0 : i32
    %c0_i32_1 = arith.constant 0 : i32
    %c0_i32_2 = arith.constant 0 : i32
    return %arg0, %c0_i32_0, %2, %c0_i32_1 : i32, i32, i32, i32
  }
  func.func @transform_2(%arg0: i32, %arg1: i32, %arg2: i32) -> (i32, i32, i32, i32) {
    %c0_i32 = arith.constant 0 : i32
    %c0_i32_0 = arith.constant 0 : i32
    %c0_i32_1 = arith.constant 0 : i32
    return %arg0, %arg1, %c0_i32, %c0_i32_0 : i32, i32, i32, i32
  }
}

</mosaic_0001>

<llo_original>
// kernel: tpu_custom_call.1
$region0: #{tpu_custom_call.1}
  #allocation0 [shape = 'u32[]', space=smem, size = 0x4, offset = 0x4, fixed_abs, tag = 'smem constant byte address 0x4 - core index']
  #allocation1 [shape = 'u32[144,128]{1,0:T(1,128)}', space=vmem, size = 0x12000, scoped, tag = 'internal scratch']
  #allocation2 [shape = 'f32[2,128]{1,0:T(2,128)}', space=vmem, size = 0x400, scoped, tag = 'scratch operand']
  %s0 = inlined_call_operand.hbm [shape: f32[2,4,2,128], index: 0, kind: input, shape index: {}]
  %s1 = inlined_call_operand.hbm [shape: f32[2,4,2,128], index: 1, kind: input, shape index: {}]
  %s2 = inlined_call_operand.hbm [shape: f32[2,1,8,128], index: 2, kind: output, shape index: {}]
  %s3 = sld [smem:[#allocation0]]
  $region57: #{tpu_custom_call.1} parent=0
    _
  %s5 = ssub.s32 1, %s3
  %s6 = scalar_select 0, %s5, %s3
  $region1: #{tpu_custom_call.1} parent=0
    #allocation3 [shape = 'u8[8192]{0}', space=vmem, size = 0x2000, scoped, tag = 'input window, operand 0']
    #allocation4 [shape = 's32[2]{0}', space=sflag, size = 0x8, scoped, tag = 'scoped memory for tpu_custom_call.1']
    #allocation5 [shape = 's32[2]{0}', space=sflag, size = 0x8, scoped, tag = 'scoped memory for tpu_custom_call.1']
    #allocation6 [shape = 'u8[8192]{0}', space=vmem, size = 0x2000, scoped, tag = 'input window, operand 1']
    #allocation7 [shape = 's32[2]{0}', space=sflag, size = 0x8, scoped, tag = 'scoped memory for tpu_custom_call.1']
    #allocation8 [shape = 'u8[8192]{0}', space=vmem, size = 0x2000, scoped, tag = 'output window, operand 0']
    %7 = vsyncpa [#allocation4], 0
    %s8 = scalar_lea.sflag [#allocation4], 1
    %9 = vsyncpa %s8, 0
    %10 = vsyncpa [#allocation7], 0
    %s11 = scalar_lea.sflag [#allocation7], 1
    %12 = vsyncpa %s11, 0
    %13 = vsyncpa [#allocation5], 0
    %s14 = scalar_lea.sflag [#allocation5], 1
    %15 = vsyncpa %s14, 0
    loop: start=0, step=1, limit=4
    $region2: #{tpu_custom_call.1} parent=1 // loop_pre_header
      _
    $region3: #{tpu_custom_call.1} parent=1 // loop_header
      %s17 = sphi 0, %s21
      %p18 = scmp.ge.s32.totalorder %s17, 4
      %s24 = sphi 0, %s43
      %s25 = sphi 0, %s39
      %s26 = sphi 0, %s35
      %s27 = sphi 0, %s24
      %s28 = sphi 0, %s25
      %s29 = sphi 0, %s26
      %s30 = sphi 0, %s27
      %s31 = sphi 0, %s28
      %s32 = sphi 0, %s29
      %s54 = sphi 0, %s56
      %s57 = sphi 0, %s54
      %s58 = sphi 0, %s57
      %s74 = sphi 0, %s58
      %s88 = sphi 0, %s90
      %s91 = sphi 0, %s88
      %s92 = sphi 0, %s91
      %s108 = sphi 0, %s92
      %s116 = sphi 0, %s118
      %s119 = sphi 0, %s116
      %s120 = sphi 0, %s119
      %s136 = sphi 0, %s120
    $region4: #{tpu_custom_call.1} parent=1 // loop_header_branch
      %20 = sbr.rel (%p18) target = $region8
    $region5: #{tpu_custom_call.1} parent=1 // loop_body
      %s22 = ssub.s32 %s17, 1
      %s23 = ssub.s32 %s17, 2
      %s33 = sadd.s32 1, %s26
      %p34 = scmp.ge.s32.totalorder %s33, 1
      %s35 = scalar_select %p34, 0, %s33
      %s36 = sadd.s32 1, %s25
      %s37 = scalar_select %p34, %s36, %s25
      %p38 = scmp.ge.s32.totalorder %s37, 1
      %s39 = scalar_select %p38, 0, %s37
      %s40 = sadd.s32 1, %s24
      %s41 = scalar_select %p38, %s40, %s24
      %p42 = scmp.ge.s32.totalorder %s41, 2
      %s43 = scalar_select %p42, 0, %s41
      %s44 = sadd.s32 %s25, %s26
      %p45 = scmp.lt.s32.totalorder %s44, 0
      %s46 = scalar_select %p45, %s44, 0
      %s47 = sadd.s32 %s39, %s35
      %p48 = scmp.lt.s32.totalorder %s47, 0
      %s49 = scalar_select %p48, %s47, 0
      %s50 = ssub.s32 %s24, %s43
      %s51 = ssub.s32 %s46, %s49
      %s52 = sor.u32 %s50, %s51
      %p53 = scmp.eq.s32.totalorder %s52, 0
      %s55 = sadd.s32 %s54, 1
      %s56 = scalar_select %p53, %s54, %s55
      %p59 = pneg %p53
      %p60 = scmp.eq.s32.totalorder %s17, 1
      %p61 = por %p59, %p60
      %p62 = scmp.ne.s32.totalorder %s54, %s57
      %p63 = scmp.eq.s32.totalorder %s17, 0
      %p64 = por %p62, %p63
      %p65 = scmp.ne.s32.totalorder %s54, %s57
      %p66 = scmp.eq.s32.totalorder %s22, 1
      %p67 = por %p65, %p66
      %p68 = scmp.ne.s32.totalorder %s57, %s58
      %p69 = scmp.eq.s32.totalorder %s22, 0
      %p70 = por %p68, %p69
      %p71 = scmp.ne.s32.totalorder %s57, %s58
      %p72 = scmp.eq.s32.totalorder %s23, 1
      %p73 = por %p71, %p72
      %p75 = scmp.ne.s32.totalorder %s58, %s74
      %p76 = scmp.eq.s32.totalorder %s23, 0
      %p77 = por %p75, %p76
      %s78 = sadd.s32 %s25, %s26
      %p79 = scmp.lt.s32.totalorder %s78, 0
      %s80 = scalar_select %p79, %s78, 0
      %s81 = sadd.s32 %s39, %s35
      %p82 = scmp.lt.s32.totalorder %s81, 0
      %s83 = scalar_select %p82, %s81, 0
      %s84 = ssub.s32 %s24, %s43
      %s85 = ssub.s32 %s80, %s83
      %s86 = sor.u32 %s84, %s85
      %p87 = scmp.eq.s32.totalorder %s86, 0
      %s89 = sadd.s32 %s88, 1
      %s90 = scalar_select %p87, %s88, %s89
      %p93 = pneg %p87
      %p94 = scmp.eq.s32.totalorder %s17, 1
      %p95 = por %p93, %p94
      %p96 = scmp.ne.s32.totalorder %s88, %s91
      %p97 = scmp.eq.s32.totalorder %s17, 0
      %p98 = por %p96, %p97
      %p99 = scmp.ne.s32.totalorder %s88, %s91
      %p100 = scmp.eq.s32.totalorder %s22, 1
      %p101 = por %p99, %p100
      %p102 = scmp.ne.s32.totalorder %s91, %s92
      %p103 = scmp.eq.s32.totalorder %s22, 0
      %p104 = por %p102, %p103
      %p105 = scmp.ne.s32.totalorder %s91, %s92
      %p106 = scmp.eq.s32.totalorder %s23, 1
      %p107 = por %p105, %p106
      %p109 = scmp.ne.s32.totalorder %s92, %s108
      %p110 = scmp.eq.s32.totalorder %s23, 0
      %p111 = por %p109, %p110
      %s112 = ssub.s32 %s24, %s43
      %s113 = ssub.s32 %s25, %s39
      %s114 = sor.u32 %s112, %s113
      %p115 = scmp.eq.s32.totalorder %s114, 0
      %s117 = sadd.s32 %s116, 1
      %s118 = scalar_select %p115, %s116, %s117
      %p121 = pneg %p115
      %p122 = scmp.eq.s32.totalorder %s17, 1
      %p123 = por %p121, %p122
      %p124 = scmp.ne.s32.totalorder %s116, %s119
      %p125 = scmp.eq.s32.totalorder %s17, 0
      %p126 = por %p124, %p125
      %p127 = scmp.ne.s32.totalorder %s116, %s119
      %p128 = scmp.eq.s32.totalorder %s22, 1
      %p129 = por %p127, %p128
      %p130 = scmp.ne.s32.totalorder %s119, %s120
      %p131 = scmp.eq.s32.totalorder %s22, 0
      %p132 = por %p130, %p131
      %p133 = scmp.ne.s32.totalorder %s119, %s120
      %p134 = scmp.eq.s32.totalorder %s23, 1
      %p135 = por %p133, %p134
      %p137 = scmp.ne.s32.totalorder %s120, %s136
      %p138 = scmp.eq.s32.totalorder %s23, 0
      %p139 = por %p137, %p138
      %p140 = scmp.le.s32.totalorder 1, %s17
      %p141 = scmp.lt.s32.totalorder %s17, 3
      %p142 = pnand %p140, %p141
      %p143 = pneg %p142
      // Predicated region
      $region9: #{tpu_custom_call.1} parent=5 // pred_check
        _
      $region10: #{tpu_custom_call.1} parent=5 // pred_check_branch
        %145 = sbr.rel (%p142) target = $region12
      $region11: #{tpu_custom_call.1} parent=5 // pred_region
        %s146 = ssub.s32 %s17, 1
      $region12: #{tpu_custom_call.1} parent=5 // pred_fallthru
        _
      %p147 = scmp.lt.s32.totalorder %s17, 2
      // Predicated region
      $region13: #{tpu_custom_call.1} parent=5 // pred_check
        %p148 = pneg %p147
      $region14: #{tpu_custom_call.1} parent=5 // pred_check_branch
        %150 = sbr.rel (%p148) target = $region16
      $region15: #{tpu_custom_call.1} parent=5 // pred_region
        // Predicated region
        $region17: #{tpu_custom_call.1} parent=15 // pred_check
          %p151 = pneg %p64
        $region18: #{tpu_custom_call.1} parent=15 // pred_check_branch
          %153 = sbr.rel (%p151) target = $region20
        $region19: #{tpu_custom_call.1} parent=15 // pred_region
          %s154 = sand.u32 %s54, 1
          %s155 = scalar_lea.sflag [#allocation4], %s154
          %s156 = sand.u32 %s54, 1
          %s157 = smul.addr %s156, 8
          %s158 = scalar_lea.vmem [#allocation3], %s157
          %s159 = sadd.s32 %s25, %s26
          %p160 = scmp.lt.s32.totalorder %s159, 0
          %s161 = scalar_select %p160, %s159, 0
          %s163 = ssub.s32 128, 128
          %164 = vsyncadd %s155, %s163
          %s165 = smul.addr %s24, 4
          %s166 = sadd.s32 %s161, %s165
          %s167 = smul.addr %s166, 32
          %s168 = scalar_lea.hbm %s0, %s167
          %s169 = sshll.u32 %s158, 4
          %s170 = int_to_ptr.vmem [resolvable:$true] %s169
          %175 = dma.hbm_to_vmem [thread:$0]  %s168, 128, %s170, %s155, 32, 32, 2
        $region20: #{tpu_custom_call.1} parent=15 // pred_fallthru
          _
        // Predicated region
        $region21: #{tpu_custom_call.1} parent=15 // pred_check
          %p176 = pneg %p98
        $region22: #{tpu_custom_call.1} parent=15 // pred_check_branch
          %178 = sbr.rel (%p176) target = $region24
        $region23: #{tpu_custom_call.1} parent=15 // pred_region
          %s179 = sand.u32 %s88, 1
          %s180 = scalar_lea.sflag [#allocation7], %s179
          %s181 = sand.u32 %s88, 1
          %s182 = smul.addr %s181, 8
          %s183 = scalar_lea.vmem [#allocation6], %s182
          %s184 = sadd.s32 %s25, %s26
          %p185 = scmp.lt.s32.totalorder %s184, 0
          %s186 = scalar_select %p185, %s184, 0
          %s188 = ssub.s32 128, 128
          %189 = vsyncadd %s180, %s188
          %s190 = smul.addr %s24, 4
          %s191 = sadd.s32 %s186, %s190
          %s192 = smul.addr %s191, 32
          %s193 = scalar_lea.hbm %s1, %s192
          %s194 = sshll.u32 %s183, 4
          %s195 = int_to_ptr.vmem [resolvable:$true] %s194
          %200 = dma.hbm_to_vmem [thread:$0]  %s193, 128, %s195, %s180, 32, 32, 2
        $region24: #{tpu_custom_call.1} parent=15 // pred_fallthru
          _
      $region16: #{tpu_custom_call.1} parent=5 // pred_fallthru
        _
      %p201 = scmp.le.s32.totalorder 1, %s17
      %p202 = scmp.lt.s32.totalorder %s17, 3
      %p203 = pnand %p201, %p202
      %p204 = pneg %p203
      // Predicated region
      $region25: #{tpu_custom_call.1} parent=5 // pred_check
        _
      $region26: #{tpu_custom_call.1} parent=5 // pred_check_branch
        %206 = sbr.rel (%p203) target = $region28
      $region27: #{tpu_custom_call.1} parent=5 // pred_region
        %s207 = ssub.s32 %s17, 1
        %s208 = sand.u32 %s57, 1
        %s209 = scalar_lea.sflag [#allocation4], %s208
        %s210 = sand.u32 %s57, 1
        %s211 = smul.addr %s210, 8
        %s212 = scalar_lea.vmem [#allocation3], %s211
        // Predicated region
        $region29: #{tpu_custom_call.1} parent=27 // pred_check
          %p213 = pneg %p70
        $region30: #{tpu_custom_call.1} parent=27 // pred_check_branch
          %215 = sbr.rel (%p213) target = $region32
        $region31: #{tpu_custom_call.1} parent=27 // pred_region
          %216 = dma.done %s209, 128
        $region32: #{tpu_custom_call.1} parent=27 // pred_fallthru
          _
        %s217 = sand.u32 %s91, 1
        %s218 = scalar_lea.sflag [#allocation7], %s217
        %s219 = sand.u32 %s91, 1
        %s220 = smul.addr %s219, 8
        %s221 = scalar_lea.vmem [#allocation6], %s220
        // Predicated region
        $region33: #{tpu_custom_call.1} parent=27 // pred_check
          %p222 = pneg %p104
        $region34: #{tpu_custom_call.1} parent=27 // pred_check_branch
          %224 = sbr.rel (%p222) target = $region36
        $region35: #{tpu_custom_call.1} parent=27 // pred_region
          %225 = dma.done %s218, 128
        $region36: #{tpu_custom_call.1} parent=27 // pred_fallthru
          _
        %s226 = sand.u32 %s57, 1
        %s227 = scalar_lea.sflag [#allocation4], %s226
        %s228 = sand.u32 %s57, 1
        %s229 = smul.addr %s228, 8
        %s230 = scalar_lea.vmem [#allocation3], %s229
        %p231 = pneg %p70
        %p232 = pneg %p67
        %s233 = sand.u32 %s91, 1
        %s234 = scalar_lea.sflag [#allocation7], %s233
        %s235 = sand.u32 %s91, 1
        %s236 = smul.addr %s235, 8
        %s237 = scalar_lea.vmem [#allocation6], %s236
        %p238 = pneg %p104
        %p239 = pneg %p101
        %p240 = pneg %p132
        %p241 = pneg %p129
        %s242 = sand.u32 %s119, 1
        %s243 = scalar_lea.sflag [#allocation5], %s242
        %s244 = sand.u32 %s119, 1
        %s245 = smul.addr %s244, 8
        %s246 = scalar_lea.vmem [#allocation8], %s245
        %s247 = sadd.s32 %s28, %s29
        %p248 = scmp.lt.s32.totalorder %s247, 0
        %s249 = scalar_select %p248, %s247, 0
        %s250 = sadd.s32 %s28, %s29
        %p251 = scmp.lt.s32.totalorder %s250, 0
        %s252 = scalar_select %p251, %s250, 0
        %p253 = scmp.eq.s32.totalorder %s29, 0
        // Predicated region
        $region37: #{tpu_custom_call.1} parent=27 // pred_check
          %p254 = pneg %p253
        $region38: #{tpu_custom_call.1} parent=27 // pred_check_branch
          %256 = sbr.rel (%p254) target = $region40
        $region39: #{tpu_custom_call.1} parent=27 // pred_region
          %257 = vst [vmem:[#allocation2] sm:$0x3] 0.0
        $region40: #{tpu_custom_call.1} parent=27 // pred_fallthru
          _
        %v258 = vld [vmem:[%s212] sm:$0x3]
        %v259 = vld [vmem:[%s221] sm:$0x3]
        %v260 = vsub.f32 1.0, %v259
        %v261 = vmul.f32 %v258, %v258
        %v262 = vadd.f32 %v261, 0.0
        %v263 = vmul.f32 %v260, %v260
        %v264 = vadd.f32 %v263, 0.0
        %s265 = scalar_lea.vmem %s212, 2 [#allocation3]
        %v266 = vld [vmem:[%s265] sm:$0x3]
        %s267 = scalar_lea.vmem %s221, 2 [#allocation6]
        %v268 = vld [vmem:[%s267] sm:$0x3]
        %v269 = vsub.f32 1.0, %v268
        %v270 = vmul.f32 %v266, %v266
        %v271 = vadd.f32 %v262, %v270
        %v272 = vmul.f32 %v269, %v269
        %v273 = vadd.f32 %v264, %v272
        %s274 = scalar_lea.vmem %s212, 4 [#allocation3]
        %v275 = vld [vmem:[%s274] sm:$0x3]
        %s276 = scalar_lea.vmem %s221, 4 [#allocation6]
        %v277 = vld [vmem:[%s276] sm:$0x3]
        %v278 = vsub.f32 1.0, %v277
        %v279 = vmul.f32 %v275, %v275
        %v280 = vadd.f32 %v271, %v279
        %v281 = vmul.f32 %v278, %v278
        %v282 = vadd.f32 %v273, %v281
        %s283 = scalar_lea.vmem %s212, 6 [#allocation3]
        %v284 = vld [vmem:[%s283] sm:$0x3]
        %s285 = scalar_lea.vmem %s221, 6 [#allocation6]
        %v286 = vld [vmem:[%s285] sm:$0x3]
        %v287 = vsub.f32 1.0, %v286
        %v288 = vmul.f32 %v284, %v284
        %v289 = vadd.f32 %v280, %v288
        %v290 = vmul.f32 %v287, %v287
        %v291 = vadd.f32 %v282, %v290
        %v292 = vrsqrt.pop %v289
        %v293 = vmul.f32 %v289, %v292
        %vm294 = vcmp.eq.f32.partialorder %v289, inf
        %v295 = vsel %vm294, %v289, %v293
        %vm296 = vcmp.eq.f32.partialorder %v289, 0.0
        %v297 = vand.u32 %v289, 2147483648
        %v298 = vsel %vm296, %v297, %v295
        %v299 = vrsqrt.pop %v291
        %v300 = vmul.f32 %v291, %v299
        %vm301 = vcmp.eq.f32.partialorder %v291, inf
        %v302 = vsel %vm301, %v291, %v300
        %vm303 = vcmp.eq.f32.partialorder %v291, 0.0
        %v304 = vand.u32 %v291, 2147483648
        %v305 = vsel %vm303, %v304, %v302
        %v306 = vadd.f32 %v298, %v305
        %v307 = vld [vmem:[#allocation2] sm:$0x3]
        %v308 = vadd.f32 %v307, %v306
        %309 = vst [vmem:[#allocation2] sm:$0x3] %v308
        // Predicated region
        $region41: #{tpu_custom_call.1} parent=27 // pred_check
          %p310 = pneg %p253
        $region42: #{tpu_custom_call.1} parent=27 // pred_check_branch
          %312 = sbr.rel (%p310) target = $region44
        $region43: #{tpu_custom_call.1} parent=27 // pred_region
          %v313 = vld [vmem:[#allocation2] sm:$0x3]
          %vm314 = vcmask 1041408
          %v315 = vsel %vm314, %v313, 0.0
          %316 = vadd.xlane.f32.xlu0 %v315
          %v317 = vpop.xlane.xlu0 %316
          %v318 = vrot.slane %v317, 4
          %v319 = vadd.f32 %v317, %v318
          %v320 = vrot.slane %v319, 2
          %v321 = vadd.f32 %v319, %v320
          %v322 = vrot.slane %v321, 1
          %v323 = vadd.f32 %v321, %v322
          %s324 = vtos %v323
          %v325 = vstv %s324
          %326 = vst [vmem:[%s246] sm:$0xff] %v325
        $region44: #{tpu_custom_call.1} parent=27 // pred_fallthru
          _
        %s327 = sand.u32 %s119, 1
        %s328 = scalar_lea.sflag [#allocation5], %s327
        %s329 = sand.u32 %s119, 1
        %s330 = smul.addr %s329, 8
        %s331 = scalar_lea.vmem [#allocation8], %s330
        // Predicated region
        $region45: #{tpu_custom_call.1} parent=27 // pred_check
          %p332 = pneg %p129
        $region46: #{tpu_custom_call.1} parent=27 // pred_check_branch
          %334 = sbr.rel (%p332) target = $region48
        $region47: #{tpu_custom_call.1} parent=27 // pred_region
          %s336 = ssub.s32 128, 128
          %337 = vsyncadd %s328, %s336
          %s338 = sadd.s32 %s28, %s27
          %s339 = smul.addr %s338, 128
          %s340 = scalar_lea.hbm %s2, %s339
          %s342 = sshll.u32 %s331, 4
          %s343 = int_to_ptr.vmem [resolvable:$true] %s342
          %345 = dma.vmem_to_hbm [thread:$0]  %s343, 128, %s340, %s328
        $region48: #{tpu_custom_call.1} parent=27 // pred_fallthru
          _
      $region28: #{tpu_custom_call.1} parent=5 // pred_fallthru
        _
      %p346 = scmp.le.s32.totalorder 2, %s17
      // Predicated region
      $region49: #{tpu_custom_call.1} parent=5 // pred_check
        %p347 = pneg %p346
      $region50: #{tpu_custom_call.1} parent=5 // pred_check_branch
        %349 = sbr.rel (%p347) target = $region52
      $region51: #{tpu_custom_call.1} parent=5 // pred_region
        %s350 = ssub.s32 %s17, 2
        // Predicated region
        $region53: #{tpu_custom_call.1} parent=51 // pred_check
          %p351 = pneg %p135
        $region54: #{tpu_custom_call.1} parent=51 // pred_check_branch
          %353 = sbr.rel (%p351) target = $region56
        $region55: #{tpu_custom_call.1} parent=51 // pred_region
          %s354 = sand.u32 %s120, 1
          %s355 = scalar_lea.sflag [#allocation5], %s354
          %s356 = sand.u32 %s120, 1
          %s357 = smul.addr %s356, 8
          %s358 = scalar_lea.vmem [#allocation8], %s357
          %359 = dma.done %s355, 128
        $region56: #{tpu_custom_call.1} parent=51 // pred_fallthru
          _
      $region52: #{tpu_custom_call.1} parent=5 // pred_fallthru
        _
    $region6: #{tpu_custom_call.1} parent=1 // loop_footer
      %s21 = sadd.s32 1, %s17
    $region7: #{tpu_custom_call.1} parent=1 // loop_footer_branch
      %16 = sbr.rel target = $region3
    $region8: #{tpu_custom_call.1} parent=1 // loop_exit
      _
    %360 = vsyncpa [#allocation4], 1
    %s361 = scalar_lea.sflag [#allocation4], 1
    %362 = vsyncpa %s361, 1
    %363 = vsyncpa [#allocation7], 1
    %s364 = scalar_lea.sflag [#allocation7], 1
    %365 = vsyncpa %s364, 1
    %366 = vsyncpa [#allocation5], 1
    %s367 = scalar_lea.sflag [#allocation5], 1
    %368 = vsyncpa %s367, 1

</llo_original>
